<compile_context>
chip_gen: v7x
topology: tpu7x:2x2x1
jax: 0.10.0
libtpu: 0.0.40
codegen_flags: <defaults>
</compile_context>

<pallas_src>
import jax
import jax.numpy as jnp
from jax.experimental import pallas as pl
from jax.experimental.pallas import tpu as pltpu

H1 = 256          # first hidden width
H2 = 128          # second hidden width
NEG_SLOPE = 0.2   # LeakyReLU slope
MAX_TILE_B = 1024  # upper bound on rows per grid step


def _leaky_relu(h):
    # max(h, 0.2*h) == LeakyReLU(0.2) since 0 < slope < 1.
    return jnp.maximum(h, NEG_SLOPE * h)


def _round_up(n, m):
    return (n + m - 1) // m * m


def _choose_tiling(batch, max_tile_b=MAX_TILE_B):
    """Adaptive batch tiling.

    - Big tiles (up to max_tile_b) so per-grid-step overhead is amortized.
    - Small batches are not padded to max_tile_b.
    - Keep >= 2 tiles whenever the batch allows it (v7x dual TensorCore).
    """
    b8 = _round_up(max(batch, 1), 8)
    n_tiles = max(pl.cdiv(b8, max_tile_b), 2 if b8 >= 16 else 1)
    tile_b = _round_up(pl.cdiv(b8, n_tiles), 8)
    n_tiles = pl.cdiv(b8, tile_b)
    return tile_b, n_tiles


def discriminator_kernel(x_ref, w1_ref, b1_ref, w2_ref, b2_ref, w3t_ref, b3_ref,
                         o_ref):
    # Layer 1: Linear + LeakyReLU  (bf16 MXU matmul, f32 accumulate/epilogue).
    x = x_ref[...].astype(jnp.bfloat16)
    h1 = jnp.dot(x, w1_ref[...], preferred_element_type=jnp.float32)
    h1 = _leaky_relu(h1 + b1_ref[...])

    # Layer 2: Linear + LeakyReLU.
    h2 = jnp.dot(h1.astype(jnp.bfloat16), w2_ref[...],
                 preferred_element_type=jnp.float32)
    h2 = _leaky_relu(h2 + b2_ref[...])

    # Layer 3: single output column.  f32 VPU broadcast-multiply + XLU lane
    # reduction (avoids a degenerate N=1 MXU matmul and any lane padding).
    logits = jnp.sum(h2 * w3t_ref[...], axis=-1, keepdims=True) + b3_ref[...]
    o_ref[...] = jax.nn.sigmoid(logits)            # (tile_b, 1) store


def prepare_params(params):
    """One-time conversion to kernel-ready layout/dtypes (not per forward)."""
    return {
        "w1": params["w1"].astype(jnp.bfloat16),                  # (D, 256)
        "b1": params["b1"].reshape(1, H1).astype(jnp.float32),    # (1, 256)
        "w2": params["w2"].astype(jnp.bfloat16),                  # (256, 128)
        "b2": params["b2"].reshape(1, H2).astype(jnp.float32),    # (1, 128)
        "w3t": params["w3"].reshape(1, H2).astype(jnp.float32),   # (1, 128) row
        "b3": params["b3"].reshape(1, 1).astype(jnp.float32),     # (1, 1)
    }


def discriminator_forward(x, prepared, *, max_tile_b=MAX_TILE_B):
    """x: (B, input_dim) f32 (or bf16). Returns (B, 1) f32 sigmoid scores."""
    B, input_dim = x.shape
    tile_b, n_tiles = _choose_tiling(B, max_tile_b)
    B_pad = tile_b * n_tiles
    if B_pad != B:
        x = jnp.pad(x, ((0, B_pad - B), (0, 0)))   # padded rows discarded below

    w1, b1 = prepared["w1"], prepared["b1"]
    w2, b2 = prepared["w2"], prepared["b2"]
    w3t, b3 = prepared["w3t"], prepared["b3"]

    const2d = lambda i: (0, 0)

    flops = 2 * B_pad * (input_dim * H1 + H1 * H2 + H2 * 1)
    bytes_accessed = (x.size * x.dtype.itemsize          # input read
                      + B_pad * 1 * 4                    # (B_pad, 1) f32 out
                      + (w1.size + w2.size) * 2          # bf16 weights
                      + (b1.size + b2.size + w3t.size + b3.size) * 4)

    out = pl.pallas_call(
        discriminator_kernel,
        out_shape=jax.ShapeDtypeStruct((B_pad, 1), jnp.float32),
        grid=(n_tiles,),
        in_specs=[
            pl.BlockSpec((tile_b, input_dim), lambda i: (i, 0)),   # x tile
            pl.BlockSpec(w1.shape, const2d),                       # VMEM-resident
            pl.BlockSpec(b1.shape, const2d),
            pl.BlockSpec(w2.shape, const2d),
            pl.BlockSpec(b2.shape, const2d),
            pl.BlockSpec(w3t.shape, const2d),
            pl.BlockSpec(b3.shape, const2d),
        ],
        out_specs=pl.BlockSpec((tile_b, 1), lambda i: (i, 0)),
        compiler_params=pltpu.CompilerParams(
            dimension_semantics=("parallel",),
            vmem_limit_bytes=32 * 1024 * 1024),
        cost_estimate=pl.CostEstimate(
            flops=flops,
            transcendentals=B_pad,               # one sigmoid per real output
            bytes_accessed=bytes_accessed),
    )(x, w1, b1, w2, b2, w3t, b3)

    return out[:B]                               # drop batch padding


def init_params(key, input_dim):
    """Deterministic PyTorch-style uniform init; weights stored as (in, out)."""
    dims = [(input_dim, H1), (H1, H2), (H2, 1)]
    params = {}
    for i, (fan_in, fan_out) in enumerate(dims, start=1):
        key, kw, kb = jax.random.split(key, 3)
        bound = 1.0 / (fan_in ** 0.5)
        params[f"w{i}"] = jax.random.uniform(
            kw, (fan_in, fan_out), jnp.float32, minval=-bound, maxval=bound)
        params[f"b{i}"] = jax.random.uniform(
            kb, (1, fan_out), jnp.float32, minval=-bound, maxval=bound)
    return params


def reference_forward(x, params):
    """Plain JAX reference with the same numeric recipe as the kernel:
    bf16 MXU matmuls + f32 epilogue for layers 1-2, f32 reduce for layer 3."""
    def mm(a, w):
        return jnp.dot(a.astype(jnp.bfloat16), w.astype(jnp.bfloat16),
                       preferred_element_type=jnp.float32)
    h1 = _leaky_relu(mm(x, params["w1"]) + params["b1"])
    h2 = _leaky_relu(mm(h1, params["w2"]) + params["b2"])
    logits = (jnp.sum(h2 * params["w3"].reshape(1, H2), axis=-1, keepdims=True)
              + params["b3"].reshape(1, 1))
    return jax.nn.sigmoid(logits)


if __name__ == "__main__":
    key = jax.random.PRNGKey(0)
    input_dim = 16
    batch = 200          # -> 2 tiles of 104 rows (208 padded), both TCs busy

    key, kx = jax.random.split(key)
    x = jax.random.normal(kx, (batch, input_dim), dtype=jnp.float32)
    params = init_params(key, input_dim)
    prepared = prepare_params(params)            # one-time bf16 weight cast

    out = discriminator_forward(x, prepared)
    out = jax.block_until_ready(out)

    # Sanity checks: shape and sigmoid output range.
    assert out.shape == (batch, 1), out.shape
    assert bool(jnp.all(out >= 0.0)) and bool(jnp.all(out <= 1.0))

    # Cross-check against a plain JAX reference with the same numeric recipe.
    ref = reference_forward(x, params)
    assert bool(jnp.allclose(out, ref, atol=2e-3, rtol=2e-3)), (
        float(jnp.max(jnp.abs(out - ref))))

    print("KERNEL_OK")
</pallas_src>

<mosaic_0001>
module attributes {stable_mosaic.version = 11 : i64} {
  func.func @discriminator_kernel(%arg0: i32, %arg1: memref<104x16xf32, #tpu.memory_space<vmem>>, %arg2: memref<16x256xbf16, #tpu.memory_space<vmem>>, %arg3: memref<1x256xf32, #tpu.memory_space<vmem>>, %arg4: memref<256x128xbf16, #tpu.memory_space<vmem>>, %arg5: memref<1x128xf32, #tpu.memory_space<vmem>>, %arg6: memref<1x128xf32, #tpu.memory_space<vmem>>, %arg7: memref<1x1xf32, #tpu.memory_space<vmem>>, %arg8: memref<104x1xf32, #tpu.memory_space<vmem>>) attributes {dimension_semantics = [#tpu.dimension_semantics<parallel>], iteration_bounds = array<i64: 2>, scalar_prefetch = 0 : i64, scratch_operands = 0 : i64, tpu.core_type = #tpu.core_type<tc>, window_params = [{transform_indices = @transform_0, window_bounds = array<i64: 104, 16>}, {pipeline_mode = #tpu.pipeline_mode<synchronous>, transform_indices = @transform_1, window_bounds = array<i64: 16, 256>}, {pipeline_mode = #tpu.pipeline_mode<synchronous>, transform_indices = @transform_2, window_bounds = array<i64: 1, 256>}, {pipeline_mode = #tpu.pipeline_mode<synchronous>, transform_indices = @transform_3, window_bounds = array<i64: 256, 128>}, {pipeline_mode = #tpu.pipeline_mode<synchronous>, transform_indices = @transform_4, window_bounds = array<i64: 1, 128>}, {pipeline_mode = #tpu.pipeline_mode<synchronous>, transform_indices = @transform_5, window_bounds = array<i64: 1, 128>}, {pipeline_mode = #tpu.pipeline_mode<synchronous>, transform_indices = @transform_6, window_bounds = array<i64: 1, 1>}, {transform_indices = @transform_7, window_bounds = array<i64: 104, 1>}]} {
    %c0 = arith.constant 0 : index
    %c0_0 = arith.constant 0 : index
    %0 = vector.load %arg1[%c0, %c0_0] : memref<104x16xf32, #tpu.memory_space<vmem>>, vector<104x16xf32>
    %1 = arith.truncf %0 : vector<104x16xf32> to vector<104x16xbf16>
    %c0_1 = arith.constant 0 : index
    %c0_2 = arith.constant 0 : index
    %2 = vector.load %arg2[%c0_1, %c0_2] : memref<16x256xbf16, #tpu.memory_space<vmem>>, vector<16x256xbf16>
    %cst = arith.constant dense<0.000000e+00> : vector<104x256xf32>
    %3 = tpu.matmul %1, %2, %cst {dimension_numbers = #tpu.dot_dimension_numbers<[1], [0], [0], [1], [0, 0, 1, 1], [], []>} : vector<104x16xbf16>, vector<16x256xbf16>, vector<104x256xf32> -> vector<104x256xf32>
    %c0_3 = arith.constant 0 : index
    %c0_4 = arith.constant 0 : index
    %4 = vector.load %arg3[%c0_3, %c0_4] : memref<1x256xf32, #tpu.memory_space<vmem>>, vector<1x256xf32>
    %5 = vector.broadcast %4 : vector<1x256xf32> to vector<104x256xf32>
    %6 = arith.addf %3, %5 : vector<104x256xf32>
    %cst_5 = arith.constant 2.000000e-01 : f32
    %7 = vector.broadcast %cst_5 : f32 to vector<104x256xf32>
    %8 = arith.mulf %7, %6 : vector<104x256xf32>
    %9 = arith.maximumf %6, %8 : vector<104x256xf32>
    %10 = arith.truncf %9 : vector<104x256xf32> to vector<104x256xbf16>
    %c0_6 = arith.constant 0 : index
    %c0_7 = arith.constant 0 : index
    %11 = vector.load %arg4[%c0_6, %c0_7] : memref<256x128xbf16, #tpu.memory_space<vmem>>, vector<256x128xbf16>
    %cst_8 = arith.constant dense<0.000000e+00> : vector<104x128xf32>
    %12 = tpu.matmul %10, %11, %cst_8 {dimension_numbers = #tpu.dot_dimension_numbers<[1], [0], [0], [1], [0, 0, 1, 1], [], []>} : vector<104x256xbf16>, vector<256x128xbf16>, vector<104x128xf32> -> vector<104x128xf32>
    %c0_9 = arith.constant 0 : index
    %c0_10 = arith.constant 0 : index
    %13 = vector.load %arg5[%c0_9, %c0_10] : memref<1x128xf32, #tpu.memory_space<vmem>>, vector<1x128xf32>
    %14 = vector.broadcast %13 : vector<1x128xf32> to vector<104x128xf32>
    %15 = arith.addf %12, %14 : vector<104x128xf32>
    %cst_11 = arith.constant 2.000000e-01 : f32
    %16 = vector.broadcast %cst_11 : f32 to vector<104x128xf32>
    %17 = arith.mulf %16, %15 : vector<104x128xf32>
    %18 = arith.maximumf %15, %17 : vector<104x128xf32>
    %c0_12 = arith.constant 0 : index
    %c0_13 = arith.constant 0 : index
    %19 = vector.load %arg6[%c0_12, %c0_13] : memref<1x128xf32, #tpu.memory_space<vmem>>, vector<1x128xf32>
    %20 = vector.broadcast %19 : vector<1x128xf32> to vector<104x128xf32>
    %21 = arith.mulf %18, %20 : vector<104x128xf32>
    %cst_14 = arith.constant dense<0.000000e+00> : vector<104xf32>
    %22 = vector.multi_reduction <add>, %21, %cst_14 [1] : vector<104x128xf32> to vector<104xf32>
    %23 = vector.shape_cast %22 : vector<104xf32> to vector<104x1xf32>
    %c0_15 = arith.constant 0 : index
    %c0_16 = arith.constant 0 : index
    %24 = vector.load %arg7[%c0_15, %c0_16] : memref<1x1xf32, #tpu.memory_space<vmem>>, vector<1x1xf32>
    %25 = vector.broadcast %24 : vector<1x1xf32> to vector<104x1xf32>
    %26 = arith.addf %23, %25 : vector<104x1xf32>
    %27 = arith.negf %26 : vector<104x1xf32>
    %28 = math.exp %27 : vector<104x1xf32>
    %cst_17 = arith.constant 1.000000e+00 : f32
    %29 = vector.broadcast %cst_17 : f32 to vector<104x1xf32>
    %30 = arith.addf %29, %28 : vector<104x1xf32>
    %31 = arith.divf %29, %30 : vector<104x1xf32>
    %c0_18 = arith.constant 0 : index
    %c0_19 = arith.constant 0 : index
    %32 = vector.load %arg8[%c0_18, %c0_19] : memref<104x1xf32, #tpu.memory_space<vmem>>, vector<104x1xf32>
    tpu.vector_store %arg8[%c0_18, %c0_19], %31 {strides = array<i32>} : memref<104x1xf32, #tpu.memory_space<vmem>>, vector<104x1xf32>,
    return
  }
  func.func @transform_0(%arg0: i32) -> (i32, i32) {
    %c0_i32 = arith.constant 0 : i32
    %c0_i32_0 = arith.constant 0 : i32
    return %arg0, %c0_i32 : i32, i32
  }
  func.func @transform_1(%arg0: i32) -> (i32, i32) {
    %c0_i32 = arith.constant 0 : i32
    %c0_i32_0 = arith.constant 0 : i32
    %c0_i32_1 = arith.constant 0 : i32
    return %c0_i32, %c0_i32_0 : i32, i32
  }
  func.func @transform_2(%arg0: i32) -> (i32, i32) {
    %c0_i32 = arith.constant 0 : i32
    %c0_i32_0 = arith.constant 0 : i32
    %c0_i32_1 = arith.constant 0 : i32
    return %c0_i32, %c0_i32_0 : i32, i32
  }
  func.func @transform_3(%arg0: i32) -> (i32, i32) {
    %c0_i32 = arith.constant 0 : i32
    %c0_i32_0 = arith.constant 0 : i32
    %c0_i32_1 = arith.constant 0 : i32
    return %c0_i32, %c0_i32_0 : i32, i32
  }
  func.func @transform_4(%arg0: i32) -> (i32, i32) {
    %c0_i32 = arith.constant 0 : i32
    %c0_i32_0 = arith.constant 0 : i32
    %c0_i32_1 = arith.constant 0 : i32
    return %c0_i32, %c0_i32_0 : i32, i32
  }
  func.func @transform_5(%arg0: i32) -> (i32, i32) {
    %c0_i32 = arith.constant 0 : i32
    %c0_i32_0 = arith.constant 0 : i32
    %c0_i32_1 = arith.constant 0 : i32
    return %c0_i32, %c0_i32_0 : i32, i32
  }
  func.func @transform_6(%arg0: i32) -> (i32, i32) {
    %c0_i32 = arith.constant 0 : i32
    %c0_i32_0 = arith.constant 0 : i32
    %c0_i32_1 = arith.constant 0 : i32
    return %c0_i32, %c0_i32_0 : i32, i32
  }
  func.func @transform_7(%arg0: i32) -> (i32, i32) {
    %c0_i32 = arith.constant 0 : i32
    %c0_i32_0 = arith.constant 0 : i32
    return %arg0, %c0_i32 : i32, i32
  }
}

</mosaic_0001>

<llo_original>
// kernel: tpu_custom_call.1
$region0: #{tpu_custom_call.1}
  #allocation0 [shape = 'u32[]', space=smem, size = 0x4, offset = 0x4, fixed_abs, tag = 'smem constant byte address 0x4 - core index']
  #allocation1 [shape = 'u32[144,128]{1,0:T(1,128)}', space=vmem, size = 0x12000, scoped, tag = 'internal scratch']
  #allocation2 [shape = 'f32[1,1]{1,0:T(1,128)S(1)}', space=vmem, size = 0x200, scoped, tag = 'scoped memory for tpu_custom_call.1']
  %s0 = inlined_call_operand.vmem [shape: f32[208,16], index: 0, kind: input, shape index: {}]
  %s1 = inlined_call_operand.vmem [shape: bf16[16,256], index: 1, kind: input, shape index: {}]
  %s2 = inlined_call_operand.vmem [shape: f32[1,256], index: 2, kind: input, shape index: {}]
  %s3 = inlined_call_operand.vmem [shape: bf16[256,128], index: 3, kind: input, shape index: {}]
  %s4 = inlined_call_operand.vmem [shape: f32[1,128], index: 4, kind: input, shape index: {}]
  %s5 = inlined_call_operand.vmem [shape: f32[1,128], index: 5, kind: input, shape index: {}]
  %s6 = inlined_call_operand.<no memory space> [shape: f32[1,1], index: 6, kind: input, shape index: {}]
  %s7 = inlined_call_operand.vmem [shape: f32[208,1], index: 7, kind: output, shape index: {}]
  %s8 = sld [smem:[#allocation0]]
  $region61: #{tpu_custom_call.1} parent=0
    _
  %s10 = ssub.s32 1, %s8
  %s11 = scalar_select 0, %s10, %s8
  %v12 = vstv %s6
  %13 = vst [vmem:[#allocation2] sm:$0x1] %v12
  loop: start=0, step=1, limit=4
  $region2: #{tpu_custom_call.1} parent=0 // loop_pre_header
    _
  $region3: #{tpu_custom_call.1} parent=0 // loop_header
    %s15 = sphi 0, %s19
    %p16 = scmp.ge.s32.totalorder %s15, 4
    %s25 = sphi 0, %s27
    %s28 = sphi 0, %s25
    %s29 = sphi 0, %s28
    %s45 = sphi 0, %s29
    %s49 = sphi 0, %s49
    %s51 = sphi 0, %s49
    %s52 = sphi 0, %s51
    %s66 = sphi 0, %s52
    %s70 = sphi 0, %s70
    %s72 = sphi 0, %s70
    %s73 = sphi 0, %s72
    %s87 = sphi 0, %s73
    %s91 = sphi 0, %s91
    %s93 = sphi 0, %s91
    %s94 = sphi 0, %s93
    %s108 = sphi 0, %s94
    %s112 = sphi 0, %s112
    %s114 = sphi 0, %s112
    %s115 = sphi 0, %s114
    %s129 = sphi 0, %s115
    %s133 = sphi 0, %s133
    %s135 = sphi 0, %s133
    %s136 = sphi 0, %s135
    %s150 = sphi 0, %s136
    %s154 = sphi 0, %s154
    %s156 = sphi 0, %s154
    %s157 = sphi 0, %s156
    %s171 = sphi 0, %s157
    %s177 = sphi 0, %s179
    %s180 = sphi 0, %s177
    %s181 = sphi 0, %s180
    %s197 = sphi 0, %s181
  $region4: #{tpu_custom_call.1} parent=0 // loop_header_branch
    %18 = sbr.rel (%p16) target = $region8
  $region5: #{tpu_custom_call.1} parent=0 // loop_body
    %s20 = ssub.s32 %s15, 1
    %s21 = ssub.s32 %s15, 2
    %s22 = sadd.s32 %s15, 1
    %s23 = ssub.s32 %s15, %s22
    %p24 = scmp.eq.s32.totalorder %s23, 0
    %s26 = sadd.s32 %s25, 1
    %s27 = scalar_select %p24, %s25, %s26
    %p30 = pneg %p24
    %p31 = scmp.eq.s32.totalorder %s15, 1
    %p32 = por %p30, %p31
    %p33 = scmp.ne.s32.totalorder %s25, %s28
    %p34 = scmp.eq.s32.totalorder %s15, 0
    %p35 = por %p33, %p34
    %p36 = scmp.ne.s32.totalorder %s25, %s28
    %p37 = scmp.eq.s32.totalorder %s20, 1
    %p38 = por %p36, %p37
    %p39 = scmp.ne.s32.totalorder %s28, %s29
    %p40 = scmp.eq.s32.totalorder %s20, 0
    %p41 = por %p39, %p40
    %p42 = scmp.ne.s32.totalorder %s28, %s29
    %p43 = scmp.eq.s32.totalorder %s21, 1
    %p44 = por %p42, %p43
    %p46 = scmp.ne.s32.totalorder %s29, %s45
    %p47 = scmp.eq.s32.totalorder %s21, 0
    %p48 = por %p46, %p47
    %s50 = sadd.s32 %s49, 1
    %p53 = scmp.eq.s32.totalorder %s15, 1
    %p54 = scmp.ne.s32.totalorder %s49, %s51
    %p55 = scmp.eq.s32.totalorder %s15, 0
    %p56 = por %p54, %p55
    %p57 = scmp.ne.s32.totalorder %s49, %s51
    %p58 = scmp.eq.s32.totalorder %s20, 1
    %p59 = por %p57, %p58
    %p60 = scmp.ne.s32.totalorder %s51, %s52
    %p61 = scmp.eq.s32.totalorder %s20, 0
    %p62 = por %p60, %p61
    %p63 = scmp.ne.s32.totalorder %s51, %s52
    %p64 = scmp.eq.s32.totalorder %s21, 1
    %p65 = por %p63, %p64
    %p67 = scmp.ne.s32.totalorder %s52, %s66
    %p68 = scmp.eq.s32.totalorder %s21, 0
    %p69 = por %p67, %p68
    %s71 = sadd.s32 %s70, 1
    %p74 = scmp.eq.s32.totalorder %s15, 1
    %p75 = scmp.ne.s32.totalorder %s70, %s72
    %p76 = scmp.eq.s32.totalorder %s15, 0
    %p77 = por %p75, %p76
    %p78 = scmp.ne.s32.totalorder %s70, %s72
    %p79 = scmp.eq.s32.totalorder %s20, 1
    %p80 = por %p78, %p79
    %p81 = scmp.ne.s32.totalorder %s72, %s73
    %p82 = scmp.eq.s32.totalorder %s20, 0
    %p83 = por %p81, %p82
    %p84 = scmp.ne.s32.totalorder %s72, %s73
    %p85 = scmp.eq.s32.totalorder %s21, 1
    %p86 = por %p84, %p85
    %p88 = scmp.ne.s32.totalorder %s73, %s87
    %p89 = scmp.eq.s32.totalorder %s21, 0
    %p90 = por %p88, %p89
    %s92 = sadd.s32 %s91, 1
    %p95 = scmp.eq.s32.totalorder %s15, 1
    %p96 = scmp.ne.s32.totalorder %s91, %s93
    %p97 = scmp.eq.s32.totalorder %s15, 0
    %p98 = por %p96, %p97
    %p99 = scmp.ne.s32.totalorder %s91, %s93
    %p100 = scmp.eq.s32.totalorder %s20, 1
    %p101 = por %p99, %p100
    %p102 = scmp.ne.s32.totalorder %s93, %s94
    %p103 = scmp.eq.s32.totalorder %s20, 0
    %p104 = por %p102, %p103
    %p105 = scmp.ne.s32.totalorder %s93, %s94
    %p106 = scmp.eq.s32.totalorder %s21, 1
    %p107 = por %p105, %p106
    %p109 = scmp.ne.s32.totalorder %s94, %s108
    %p110 = scmp.eq.s32.totalorder %s21, 0
    %p111 = por %p109, %p110
    %s113 = sadd.s32 %s112, 1
    %p116 = scmp.eq.s32.totalorder %s15, 1
    %p117 = scmp.ne.s32.totalorder %s112, %s114
    %p118 = scmp.eq.s32.totalorder %s15, 0
    %p119 = por %p117, %p118
    %p120 = scmp.ne.s32.totalorder %s112, %s114
    %p121 = scmp.eq.s32.totalorder %s20, 1
    %p122 = por %p120, %p121
    %p123 = scmp.ne.s32.totalorder %s114, %s115
    %p124 = scmp.eq.s32.totalorder %s20, 0
    %p125 = por %p123, %p124
    %p126 = scmp.ne.s32.totalorder %s114, %s115
    %p127 = scmp.eq.s32.totalorder %s21, 1
    %p128 = por %p126, %p127
    %p130 = scmp.ne.s32.totalorder %s115, %s129
    %p131 = scmp.eq.s32.totalorder %s21, 0
    %p132 = por %p130, %p131
    %s134 = sadd.s32 %s133, 1
    %p137 = scmp.eq.s32.totalorder %s15, 1
    %p138 = scmp.ne.s32.totalorder %s133, %s135
    %p139 = scmp.eq.s32.totalorder %s15, 0
    %p140 = por %p138, %p139
    %p141 = scmp.ne.s32.totalorder %s133, %s135
    %p142 = scmp.eq.s32.totalorder %s20, 1
    %p143 = por %p141, %p142
    %p144 = scmp.ne.s32.totalorder %s135, %s136
    %p145 = scmp.eq.s32.totalorder %s20, 0
    %p146 = por %p144, %p145
    %p147 = scmp.ne.s32.totalorder %s135, %s136
    %p148 = scmp.eq.s32.totalorder %s21, 1
    %p149 = por %p147, %p148
    %p151 = scmp.ne.s32.totalorder %s136, %s150
    %p152 = scmp.eq.s32.totalorder %s21, 0
    %p153 = por %p151, %p152
    %s155 = sadd.s32 %s154, 1
    %p158 = scmp.eq.s32.totalorder %s15, 1
    %p159 = scmp.ne.s32.totalorder %s154, %s156
    %p160 = scmp.eq.s32.totalorder %s15, 0
    %p161 = por %p159, %p160
    %p162 = scmp.ne.s32.totalorder %s154, %s156
    %p163 = scmp.eq.s32.totalorder %s20, 1
    %p164 = por %p162, %p163
    %p165 = scmp.ne.s32.totalorder %s156, %s157
    %p166 = scmp.eq.s32.totalorder %s20, 0
    %p167 = por %p165, %p166
    %p168 = scmp.ne.s32.totalorder %s156, %s157
    %p169 = scmp.eq.s32.totalorder %s21, 1
    %p170 = por %p168, %p169
    %p172 = scmp.ne.s32.totalorder %s157, %s171
    %p173 = scmp.eq.s32.totalorder %s21, 0
    %p174 = por %p172, %p173
    %s175 = ssub.s32 %s15, %s22
    %p176 = scmp.eq.s32.totalorder %s175, 0
    %s178 = sadd.s32 %s177, 1
    %s179 = scalar_select %p176, %s177, %s178
    %p182 = pneg %p176
    %p183 = scmp.eq.s32.totalorder %s15, 1
    %p184 = por %p182, %p183
    %p185 = scmp.ne.s32.totalorder %s177, %s180
    %p186 = scmp.eq.s32.totalorder %s15, 0
    %p187 = por %p185, %p186
    %p188 = scmp.ne.s32.totalorder %s177, %s180
    %p189 = scmp.eq.s32.totalorder %s20, 1
    %p190 = por %p188, %p189
    %p191 = scmp.ne.s32.totalorder %s180, %s181
    %p192 = scmp.eq.s32.totalorder %s20, 0
    %p193 = por %p191, %p192
    %p194 = scmp.ne.s32.totalorder %s180, %s181
    %p195 = scmp.eq.s32.totalorder %s21, 1
    %p196 = por %p194, %p195
    %p198 = scmp.ne.s32.totalorder %s181, %s197
    %p199 = scmp.eq.s32.totalorder %s21, 0
    %p200 = por %p198, %p199
    %p201 = scmp.le.s32.totalorder 1, %s15
    %p202 = scmp.lt.s32.totalorder %s15, 3
    %p203 = pnand %p201, %p202
    %p204 = pneg %p203
    // Predicated region
    $region9: #{tpu_custom_call.1} parent=5 // pred_check
      _
    $region10: #{tpu_custom_call.1} parent=5 // pred_check_branch
      %206 = sbr.rel (%p203) target = $region12
    $region11: #{tpu_custom_call.1} parent=5 // pred_region
      %s207 = ssub.s32 %s15, 1
      // Predicated region
      $region13: #{tpu_custom_call.1} parent=11 // pred_check
        %p208 = pneg %p62
      $region14: #{tpu_custom_call.1} parent=11 // pred_check_branch
        %210 = sbr.rel (%p208) target = $region16
      $region15: #{tpu_custom_call.1} parent=11 // pred_region
        _
      $region16: #{tpu_custom_call.1} parent=11 // pred_fallthru
        _
      // Predicated region
      $region17: #{tpu_custom_call.1} parent=11 // pred_check
        %p211 = pneg %p83
      $region18: #{tpu_custom_call.1} parent=11 // pred_check_branch
        %213 = sbr.rel (%p211) target = $region20
      $region19: #{tpu_custom_call.1} parent=11 // pred_region
        _
      $region20: #{tpu_custom_call.1} parent=11 // pred_fallthru
        _
      // Predicated region
      $region21: #{tpu_custom_call.1} parent=11 // pred_check
        %p214 = pneg %p104
      $region22: #{tpu_custom_call.1} parent=11 // pred_check_branch
        %216 = sbr.rel (%p214) target = $region24
      $region23: #{tpu_custom_call.1} parent=11 // pred_region
        _
      $region24: #{tpu_custom_call.1} parent=11 // pred_fallthru
        _
      // Predicated region
      $region25: #{tpu_custom_call.1} parent=11 // pred_check
        %p217 = pneg %p125
      $region26: #{tpu_custom_call.1} parent=11 // pred_check_branch
        %219 = sbr.rel (%p217) target = $region28
      $region27: #{tpu_custom_call.1} parent=11 // pred_region
        _
      $region28: #{tpu_custom_call.1} parent=11 // pred_fallthru
        _
      // Predicated region
      $region29: #{tpu_custom_call.1} parent=11 // pred_check
        %p220 = pneg %p146
      $region30: #{tpu_custom_call.1} parent=11 // pred_check_branch
        %222 = sbr.rel (%p220) target = $region32
      $region31: #{tpu_custom_call.1} parent=11 // pred_region
        _
      $region32: #{tpu_custom_call.1} parent=11 // pred_fallthru
        _
      // Predicated region
      $region33: #{tpu_custom_call.1} parent=11 // pred_check
        %p223 = pneg %p167
      $region34: #{tpu_custom_call.1} parent=11 // pred_check_branch
        %225 = sbr.rel (%p223) target = $region36
      $region35: #{tpu_custom_call.1} parent=11 // pred_region
        _
      $region36: #{tpu_custom_call.1} parent=11 // pred_fallthru
        _
    $region12: #{tpu_custom_call.1} parent=5 // pred_fallthru
      _
    %p226 = scmp.lt.s32.totalorder %s15, 2
    // Predicated region
    $region37: #{tpu_custom_call.1} parent=5 // pred_check
      %p227 = pneg %p226
    $region38: #{tpu_custom_call.1} parent=5 // pred_check_branch
      %229 = sbr.rel (%p227) target = $region40
    $region39: #{tpu_custom_call.1} parent=5 // pred_region
      // Predicated region
      $region41: #{tpu_custom_call.1} parent=39 // pred_check
        %p230 = pneg %p35
      $region42: #{tpu_custom_call.1} parent=39 // pred_check_branch
        %232 = sbr.rel (%p230) target = $region44
      $region43: #{tpu_custom_call.1} parent=39 // pred_region
        %s233 = smul.u32 13, %s15
        %p234 = scmp.lt.s32.totalorder %s233, 25
        %s235 = scalar_select %p234, %s233, 25
        %s236 = smul.addr %s235, 8
        %s237 = scalar_lea.vmem %s0, %s236
        %s238 = smul.u32 13, %s15
      $region44: #{tpu_custom_call.1} parent=39 // pred_fallthru
        _
    $region40: #{tpu_custom_call.1} parent=5 // pred_fallthru
      _
    %p239 = scmp.le.s32.totalorder 1, %s15
    %p240 = scmp.lt.s32.totalorder %s15, 3
    %p241 = pnand %p239, %p240
    %p242 = pneg %p241
    // Predicated region
    $region45: #{tpu_custom_call.1} parent=5 // pred_check
      _
    $region46: #{tpu_custom_call.1} parent=5 // pred_check_branch
      %244 = sbr.rel (%p241) target = $region48
    $region47: #{tpu_custom_call.1} parent=5 // pred_region
      %s245 = ssub.s32 %s15, 1
      %s246 = smul.u32 13, %s20
      %p247 = scmp.lt.s32.totalorder %s246, 25
      %s248 = scalar_select %p247, %s246, 25
      %s249 = smul.addr %s248, 8
      %s250 = scalar_lea.vmem %s0, %s249
      %p251 = pneg %p41
      %p252 = pneg %p38
      %p253 = pneg %p62
      %p254 = pneg %p59
      %p255 = pneg %p83
      %p256 = pneg %p80
      %p257 = pneg %p104
      %p258 = pneg %p101
      %p259 = pneg %p125
      %p260 = pneg %p122
      %p261 = pneg %p146
      %p262 = pneg %p143
      %p263 = pneg %p167
      %p264 = pneg %p164
      %p265 = pneg %p193
      %p266 = pneg %p190
      %s267 = smul.u32 13, %s20
      %p268 = scmp.lt.s32.totalorder %s267, 25
      %s269 = scalar_select %p268, %s267, 25
      %s270 = smul.addr %s269, 8
      %s271 = scalar_lea.vmem %s7, %s270
      %s272 = smul.u32 13, %s20
      %p273 = scmp.lt.s32.totalorder %s272, 25
      %s274 = scalar_select %p273, %s272, 25
      %s275 = smul.addr %s274, 8
      %s276 = scalar_lea.vmem %s0, %s275
      %s277 = smul.u32 13, %s20
      %s278 = smul.u32 13, %s20
      %p279 = scmp.lt.s32.totalorder %s278, 25
      %s280 = scalar_select %p279, %s278, 25
      %s281 = smul.addr %s280, 8
      %s282 = scalar_lea.vmem %s7, %s281
      %s283 = smul.u32 13, %s20
      %v285 = vld [vmem:[%s276] sm:$0xff]
      %v286 = vld [vmem:[%s276 + $0x8] sm:$0xff]
      %v287 = vld [vmem:[%s276 + $0x10] sm:$0xff]
      %v288 = vld [vmem:[%s276 + $0x18] sm:$0xff]
      %v289 = vld [vmem:[%s276 + $0x20] sm:$0xff]
      %v290 = vld [vmem:[%s276 + $0x28] sm:$0xff]
      %v291 = vld [vmem:[%s276 + $0x30] sm:$0xff]
      %v292 = vld [vmem:[%s276 + $0x38] sm:$0xff]
      %v293 = vld [vmem:[%s276 + $0x40] sm:$0xff]
      %v294 = vld [vmem:[%s276 + $0x48] sm:$0xff]
      %v295 = vld [vmem:[%s276 + $0x50] sm:$0xff]
      %v296 = vld [vmem:[%s276 + $0x58] sm:$0xff]
      %v297 = vld [vmem:[%s276 + $0x60] sm:$0xff]
      %v298 = vpack.c.bf16 %v286, %v285
      %v299 = vpack.c.bf16 %v288, %v287
      %v300 = vpack.c.bf16 %v290, %v289
      %v301 = vpack.c.bf16 %v292, %v291
      %v302 = vpack.c.bf16 %v294, %v293
      %v303 = vpack.c.bf16 %v296, %v295
      %v304 = vpack.c.bf16 %v297, %v297
      %v305 = vld [vmem:[%s1] sm:$0xff]
      %v306 = vld [vmem:[%s1 + $0x8] sm:$0xff]
      %v307 = vld [vmem:[%s2] sm:$0x3]
      %v309 = vlaneseq
      %v310 = vshrl.u32 %v309, 7
      %v311 = vsub.s32 0, %v310
      %v312 = vrot.slane %v307, %v311
      %v313 = vlaneseq
      %v314 = vshrl.u32 %v313, 7
      %v315 = vsub.s32 1, %v314
      %v316 = vrot.slane %v307, %v315
      %v321 = vunpack.c.l.b16 %v305
      %v322 = vunpack.c.h.b16 %v305
      %v323 = vunpack.c.l.b16 %v306
      %v324 = vunpack.c.h.b16 %v306
      %v325 = vpack.c.b16 %v323, %v321
      %v326 = vpack.c.b16 %v324, %v322
      %vm329 = vcmask 130048
      %v331 = vsel %vm329, %v298, 0
      %v334 = vsel %vm329, %v299, 0
      %v337 = vsel %vm329, %v300, 0
      %v340 = vsel %vm329, %v301, 0
      %v343 = vsel %vm329, %v302, 0
      %v346 = vsel %vm329, %v303, 0
      %v349 = vsel %vm329, %v304, 0
      %351 = vmatprep.subr.bf16.mxu0 %v326
      %352 = vmatpush1.bf16.msra.mxu0 %v325
      %353 = vmatprep.subr.bf16.mxu0 0
      %354 = vmatpush1.bf16.msra.mxu0 0
      %355 = vmatprep.subr.bf16.mxu0 0
      %356 = vmatpush1.bf16.msra.mxu0 0
      %357 = vmatprep.subr.bf16.mxu0 0
      %358 = vmatpush1.bf16.msra.mxu0 0
      %359 = vmatprep.subr.bf16.mxu0 0
      %360 = vmatpush1.bf16.msra.mxu0 0
      %361 = vmatprep.subr.bf16.mxu0 0
      %362 = vmatpush1.bf16.msra.mxu0 0
      %363 = vmatprep.subr.bf16.mxu0 0
      %364 = vmatpush1.bf16.msra.mxu0 0
      %365 = vmatprep.subr.bf16.mxu0 0
      %366 = vmatpush1.bf16.msra.mxu0 0
      %367 = vmatprep.subr.bf16.mxu0 0
      %368 = vmatpush1.bf16.msra.mxu0 0
      %369 = vmatprep.subr.bf16.mxu0 0
      %370 = vmatpush1.bf16.msra.mxu0 0
      %371 = vmatprep.subr.bf16.mxu0 0
      %372 = vmatpush1.bf16.msra.mxu0 0
      %373 = vmatprep.subr.bf16.mxu0 0
      %374 = vmatpush1.bf16.msra.mxu0 0
      %375 = vmatprep.subr.bf16.mxu0 0
      %376 = vmatpush1.bf16.msra.mxu0 0
      %377 = vmatprep.subr.bf16.mxu0 0
      %378 = vmatpush1.bf16.msra.mxu0 0
      %379 = vmatprep.subr.bf16.mxu0 0
      %380 = vmatpush1.bf16.msra.mxu0 0
      %381 = vmatprep.subr.bf16.mxu0 0
      %382 = vmatpush1.bf16.msra.mxu0 0
      %383 = vmatprep.mubr.bf16.mxu0 0
      %384 = vmatmul.mubr.bf16.gmra.mrb[0].mxu0 %v331
      %v385 = vpop.f32.mrb[0].mxu0
      %v386 = vadd.f32 %v312, %v385
      %v387 = vpop.f32.mrb[0].mxu0
      %v388 = vadd.f32 %v316, %v387
      %v389 = vpop.f32.mrb[0].mxu0
      %v390 = vadd.f32 %v312, %v389
      %v391 = vpop.f32.mrb[0].mxu0
      %v392 = vadd.f32 %v316, %v391
      %393 = vmatprep.mubr.bf16.mxu0 0
      %394 = vmatmul.mubr.bf16.gmra.mrb[0].mxu0 %v334
      %v395 = vpop.f32.mrb[0].mxu0
      %v396 = vadd.f32 %v312, %v395
      %v397 = vpop.f32.mrb[0].mxu0
      %v398 = vadd.f32 %v316, %v397
      %v399 = vpop.f32.mrb[0].mxu0
      %v400 = vadd.f32 %v312, %v399
      %v401 = vpop.f32.mrb[0].mxu0
      %v402 = vadd.f32 %v316, %v401
      %403 = vmatprep.mubr.bf16.mxu0 0
      %404 = vmatmul.mubr.bf16.gmra.mrb[0].mxu0 %v337
      %v405 = vpop.f32.mrb[0].mxu0
      %v406 = vadd.f32 %v312, %v405
      %v407 = vpop.f32.mrb[0].mxu0
      %v408 = vadd.f32 %v316, %v407
      %v409 = vpop.f32.mrb[0].mxu0
      %v410 = vadd.f32 %v312, %v409
      %v411 = vpop.f32.mrb[0].mxu0
      %v412 = vadd.f32 %v316, %v411
      %413 = vmatprep.mubr.bf16.mxu0 0
      %414 = vmatmul.mubr.bf16.gmra.mrb[0].mxu0 %v340
      %v415 = vpop.f32.mrb[0].mxu0
      %v416 = vadd.f32 %v312, %v415
      %v417 = vpop.f32.mrb[0].mxu0
      %v418 = vadd.f32 %v316, %v417
      %v419 = vpop.f32.mrb[0].mxu0
      %v420 = vadd.f32 %v312, %v419
      %v421 = vpop.f32.mrb[0].mxu0
      %v422 = vadd.f32 %v316, %v421
      %423 = vmatprep.mubr.bf16.mxu0 0
      %424 = vmatmul.mubr.bf16.gmra.mrb[0].mxu0 %v343
      %v425 = vpop.f32.mrb[0].mxu0
      %v426 = vadd.f32 %v312, %v425
      %v427 = vpop.f32.mrb[0].mxu0
      %v428 = vadd.f32 %v316, %v427
      %v429 = vpop.f32.mrb[0].mxu0
      %v430 = vadd.f32 %v312, %v429
      %v431 = vpop.f32.mrb[0].mxu0
      %v432 = vadd.f32 %v316, %v431
      %433 = vmatprep.mubr.bf16.mxu0 0
      %434 = vmatmul.mubr.bf16.gmra.mrb[0].mxu0 %v346
      %v435 = vpop.f32.mrb[0].mxu0
      %v436 = vadd.f32 %v312, %v435
      %v437 = vpop.f32.mrb[0].mxu0
      %v438 = vadd.f32 %v316, %v437
      %v439 = vpop.f32.mrb[0].mxu0
      %v440 = vadd.f32 %v312, %v439
      %v441 = vpop.f32.mrb[0].mxu0
      %v442 = vadd.f32 %v316, %v441
      %443 = vmatprep.mubr.bf16.mxu0 0
      %444 = vmatmul.mubr.bf16.gmra.mrb[0].mxu0 %v349
      %v445 = vpop.f32.mrb[0].mxu0
      %v446 = vadd.f32 %v312, %v445
      %v447 = vpop.f32.mrb[0].mxu0
      %v448 = vadd.f32 %v316, %v447
      %v449 = vpop.f32.mrb[0].mxu0
      %v450 = vpop.f32.mrb[0].mxu0
      %451 = vdwg.mxu0
      %v452 = vmul.f32 %v386, 0.2
      %v453 = vmul.f32 %v388, 0.2
      %v454 = vmul.f32 %v390, 0.2
      %v455 = vmul.f32 %v392, 0.2
      %v456 = vmul.f32 %v396, 0.2
      %v457 = vmul.f32 %v398, 0.2
      %v458 = vmul.f32 %v400, 0.2
      %v459 = vmul.f32 %v402, 0.2
      %v460 = vmul.f32 %v406, 0.2
      %v461 = vmul.f32 %v408, 0.2
      %v462 = vmul.f32 %v410, 0.2
      %v463 = vmul.f32 %v412, 0.2
      %v464 = vmul.f32 %v416, 0.2
      %v465 = vmul.f32 %v418, 0.2
      %v466 = vmul.f32 %v420, 0.2
      %v467 = vmul.f32 %v422, 0.2
      %v468 = vmul.f32 %v426, 0.2
      %v469 = vmul.f32 %v428, 0.2
      %v470 = vmul.f32 %v430, 0.2
      %v471 = vmul.f32 %v432, 0.2
      %v472 = vmul.f32 %v436, 0.2
      %v473 = vmul.f32 %v438, 0.2
      %v474 = vmul.f32 %v440, 0.2
      %v475 = vmul.f32 %v442, 0.2
      %v476 = vmul.f32 %v446, 0.2
      %v477 = vmul.f32 %v448, 0.2
      %v478 = vmax.f32 %v386, %v452
      %v479 = vmax.f32 %v388, %v453
      %v480 = vmax.f32 %v390, %v454
      %v481 = vmax.f32 %v392, %v455
      %v482 = vmax.f32 %v396, %v456
      %v483 = vmax.f32 %v398, %v457
      %v484 = vmax.f32 %v400, %v458
      %v485 = vmax.f32 %v402, %v459
      %v486 = vmax.f32 %v406, %v460
      %v487 = vmax.f32 %v408, %v461
      %v488 = vmax.f32 %v410, %v462
      %v489 = vmax.f32 %v412, %v463
      %v490 = vmax.f32 %v416, %v464
      %v491 = vmax.f32 %v418, %v465
      %v492 = vmax.f32 %v420, %v466
      %v493 = vmax.f32 %v422, %v467
      %v494 = vmax.f32 %v426, %v468
      %v495 = vmax.f32 %v428, %v469
      %v496 = vmax.f32 %v430, %v470
      %v497 = vmax.f32 %v432, %v471
      %v498 = vmax.f32 %v436, %v472
      %v499 = vmax.f32 %v438, %v473
      %v500 = vmax.f32 %v440, %v474
      %v501 = vmax.f32 %v442, %v475
      %v502 = vmax.f32 %v446, %v476
      %v503 = vmax.f32 %v448, %v477
      %v504 = vpack.c.bf16 %v480, %v478
      %v505 = vpack.c.bf16 %v481, %v479
      %v506 = vpack.c.bf16 %v484, %v482
      %v507 = vpack.c.bf16 %v485, %v483
      %v508 = vpack.c.bf16 %v488, %v486
      %v509 = vpack.c.bf16 %v489, %v487
      %v510 = vpack.c.bf16 %v492, %v490
      %v511 = vpack.c.bf16 %v493, %v491
      %v512 = vpack.c.bf16 %v496, %v494
      %v513 = vpack.c.bf16 %v497, %v495
      %v514 = vpack.c.bf16 %v500, %v498
      %v515 = vpack.c.bf16 %v501, %v499
      %v516 = vpack.c.bf16 %v502, %v502
      %v517 = vpack.c.bf16 %v503, %v503
      %v518 = vld [vmem:[%s3] sm:$0xf]
      %v519 = vld [vmem:[%s3 + $0x4] sm:$0xf]
      %v520 = vld [vmem:[%s3 + $0x8] sm:$0xf]
      %v521 = vld [vmem:[%s3 + $0xc] sm:$0xf]
      %v522 = vld [vmem:[%s3 + $0x10] sm:$0xf]
      %v523 = vld [vmem:[%s3 + $0x14] sm:$0xf]
      %v524 = vld [vmem:[%s3 + $0x18] sm:$0xf]
      %v525 = vld [vmem:[%s3 + $0x1c] sm:$0xf]
      %v526 = vld [vmem:[%s3 + $0x20] sm:$0xf]
      %v527 = vld [vmem:[%s3 + $0x24] sm:$0xf]
      %v528 = vld [vmem:[%s3 + $0x28] sm:$0xf]
      %v529 = vld [vmem:[%s3 + $0x2c] sm:$0xf]
      %v530 = vld [vmem:[%s3 + $0x30] sm:$0xf]
      %v531 = vld [vmem:[%s3 + $0x34] sm:$0xf]
      %v532 = vld [vmem:[%s3 + $0x38] sm:$0xf]
      %v533 = vld [vmem:[%s3 + $0x3c] sm:$0xf]
      %v534 = vld [vmem:[%s3 + $0x40] sm:$0xf]
      %v535 = vld [vmem:[%s3 + $0x44] sm:$0xf]
      %v536 = vld [vmem:[%s3 + $0x48] sm:$0xf]
      %v537 = vld [vmem:[%s3 + $0x4c] sm:$0xf]
      %v538 = vld [vmem:[%s3 + $0x50] sm:$0xf]
      %v539 = vld [vmem:[%s3 + $0x54] sm:$0xf]
      %v540 = vld [vmem:[%s3 + $0x58] sm:$0xf]
      %v541 = vld [vmem:[%s3 + $0x5c] sm:$0xf]
      %v542 = vld [vmem:[%s3 + $0x60] sm:$0xf]
      %v543 = vld [vmem:[%s3 + $0x64] sm:$0xf]
      %v544 = vld [vmem:[%s3 + $0x68] sm:$0xf]
      %v545 = vld [vmem:[%s3 + $0x6c] sm:$0xf]
      %v546 = vld [vmem:[%s3 + $0x70] sm:$0xf]
      %v547 = vld [vmem:[%s3 + $0x74] sm:$0xf]
      %v548 = vld [vmem:[%s3 + $0x78] sm:$0xf]
      %v549 = vld [vmem:[%s3 + $0x7c] sm:$0xf]
      %v550 = vld [vmem:[%s4] sm:$0x1]
      %v552 = vlaneseq
      %v553 = vshrl.u32 %v552, 7
      %v554 = vsub.s32 0, %v553
      %v555 = vrot.slane %v550, %v554
      %v589 = vunpack.c.l.b16 %v518
      %v590 = vunpack.c.l.b16 %v519
      %v591 = vunpack.c.l.b16 %v520
      %v592 = vunpack.c.l.b16 %v521
      %v593 = vunpack.c.l.b16 %v522
      %v594 = vunpack.c.l.b16 %v523
      %v595 = vunpack.c.l.b16 %v524
      %v596 = vunpack.c.l.b16 %v525
      %v597 = vunpack.c.l.b16 %v526
      %v598 = vunpack.c.l.b16 %v527
      %v599 = vunpack.c.l.b16 %v528
      %v600 = vunpack.c.l.b16 %v529
      %v601 = vunpack.c.l.b16 %v530
      %v602 = vunpack.c.l.b16 %v531
      %v603 = vunpack.c.l.b16 %v532
      %v604 = vunpack.c.l.b16 %v533
      %v605 = vunpack.c.l.b16 %v534
      %v606 = vunpack.c.l.b16 %v535
      %v607 = vunpack.c.l.b16 %v536
      %v608 = vunpack.c.l.b16 %v537
      %v609 = vunpack.c.l.b16 %v538
      %v610 = vunpack.c.l.b16 %v539
      %v611 = vunpack.c.l.b16 %v540
      %v612 = vunpack.c.l.b16 %v541
      %v613 = vunpack.c.l.b16 %v542
      %v614 = vunpack.c.l.b16 %v543
      %v615 = vunpack.c.l.b16 %v544
      %v616 = vunpack.c.l.b16 %v545
      %v617 = vunpack.c.l.b16 %v546
      %v618 = vunpack.c.l.b16 %v547
      %v619 = vunpack.c.l.b16 %v548
      %v620 = vunpack.c.l.b16 %v549
      %v621 = vpack.c.b16 %v590, %v589
      %v622 = vpack.c.b16 %v592, %v591
      %v623 = vpack.c.b16 %v594, %v593
      %v624 = vpack.c.b16 %v596, %v595
      %v625 = vpack.c.b16 %v598, %v597
      %v626 = vpack.c.b16 %v600, %v599
      %v627 = vpack.c.b16 %v602, %v601
      %v628 = vpack.c.b16 %v604, %v603
      %v629 = vpack.c.b16 %v606, %v605
      %v630 = vpack.c.b16 %v608, %v607
      %v631 = vpack.c.b16 %v610, %v609
      %v632 = vpack.c.b16 %v612, %v611
      %v633 = vpack.c.b16 %v614, %v613
      %v634 = vpack.c.b16 %v616, %v615
      %v635 = vpack.c.b16 %v618, %v617
      %v636 = vpack.c.b16 %v620, %v619
      %653 = vmatprep.subr.bf16.mxu0 0
      %654 = vmatpush1.bf16.msra.mxu0 %v621
      %655 = vmatprep.subr.bf16.mxu0 0
      %656 = vmatpush1.bf16.msra.mxu0 %v622
      %657 = vmatprep.subr.bf16.mxu0 0
      %658 = vmatpush1.bf16.msra.mxu0 %v623
      %659 = vmatprep.subr.bf16.mxu0 0
      %660 = vmatpush1.bf16.msra.mxu0 %v624
      %661 = vmatprep.subr.bf16.mxu0 0
      %662 = vmatpush1.bf16.msra.mxu0 %v625
      %663 = vmatprep.subr.bf16.mxu0 0
      %664 = vmatpush1.bf16.msra.mxu0 %v626
      %665 = vmatprep.subr.bf16.mxu0 0
      %666 = vmatpush1.bf16.msra.mxu0 %v627
      %667 = vmatprep.subr.bf16.mxu0 0
      %668 = vmatpush1.bf16.msra.mxu0 %v628
      %669 = vmatprep.subr.bf16.mxu0 0
      %670 = vmatpush1.bf16.msra.mxu0 %v629
      %671 = vmatprep.subr.bf16.mxu0 0
      %672 = vmatpush1.bf16.msra.mxu0 %v630
      %673 = vmatprep.subr.bf16.mxu0 0
      %674 = vmatpush1.bf16.msra.mxu0 %v631
      %675 = vmatprep.subr.bf16.mxu0 0
      %676 = vmatpush1.bf16.msra.mxu0 %v632
      %677 = vmatprep.subr.bf16.mxu0 0
      %678 = vmatpush1.bf16.msra.mxu0 %v633
      %679 = vmatprep.subr.bf16.mxu0 0
      %680 = vmatpush1.bf16.msra.mxu0 %v634
      %681 = vmatprep.subr.bf16.mxu0 0
      %682 = vmatpush1.bf16.msra.mxu0 %v635
      %683 = vmatprep.subr.bf16.mxu0 0
      %684 = vmatpush1.bf16.msra.mxu0 %v636
      %685 = vmatprep.mubr.bf16.mxu0 %v505
      %686 = vmatmul.mubr.bf16.gmra.mrb[0].mxu0 %v504
      %v687 = vpop.f32.mrb[0].mxu0
      %v688 = vadd.f32 %v555, %v687
      %v689 = vpop.f32.mrb[0].mxu0
      %v690 = vpop.f32.mrb[0].mxu0
      %v691 = vadd.f32 %v555, %v690
      %v692 = vpop.f32.mrb[0].mxu0
      %693 = vmatprep.mubr.bf16.mxu0 %v507
      %694 = vmatmul.mubr.bf16.gmra.mrb[0].mxu0 %v506
      %v695 = vpop.f32.mrb[0].mxu0
      %v696 = vadd.f32 %v555, %v695
      %v697 = vpop.f32.mrb[0].mxu0
      %v698 = vpop.f32.mrb[0].mxu0
      %v699 = vadd.f32 %v555, %v698
      %v700 = vpop.f32.mrb[0].mxu0
      %701 = vmatprep.mubr.bf16.mxu0 %v509
      %702 = vmatmul.mubr.bf16.gmra.mrb[0].mxu0 %v508
      %v703 = vpop.f32.mrb[0].mxu0
      %v704 = vadd.f32 %v555, %v703
      %v705 = vpop.f32.mrb[0].mxu0
      %v706 = vpop.f32.mrb[0].mxu0
      %v707 = vadd.f32 %v555, %v706
      %v708 = vpop.f32.mrb[0].mxu0
      %709 = vmatprep.mubr.bf16.mxu0 %v511
      %710 = vmatmul.mubr.bf16.gmra.mrb[0].mxu0 %v510
      %v711 = vpop.f32.mrb[0].mxu0
      %v712 = vadd.f32 %v555, %v711
      %v713 = vpop.f32.mrb[0].mxu0
      %v714 = vpop.f32.mrb[0].mxu0
      %v715 = vadd.f32 %v555, %v714
      %v716 = vpop.f32.mrb[0].mxu0
      %717 = vmatprep.mubr.bf16.mxu0 %v513
      %718 = vmatmul.mubr.bf16.gmra.mrb[0].mxu0 %v512
      %v719 = vpop.f32.mrb[0].mxu0
      %v720 = vadd.f32 %v555, %v719
      %v721 = vpop.f32.mrb[0].mxu0
      %v722 = vpop.f32.mrb[0].mxu0
      %v723 = vadd.f32 %v555, %v722
      %v724 = vpop.f32.mrb[0].mxu0
      %725 = vmatprep.mubr.bf16.mxu0 %v515
      %726 = vmatmul.mubr.bf16.gmra.mrb[0].mxu0 %v514
      %v727 = vpop.f32.mrb[0].mxu0
      %v728 = vadd.f32 %v555, %v727
      %v729 = vpop.f32.mrb[0].mxu0
      %v730 = vpop.f32.mrb[0].mxu0
      %v731 = vadd.f32 %v555, %v730
      %v732 = vpop.f32.mrb[0].mxu0
      %733 = vmatprep.mubr.bf16.mxu0 %v517
      %734 = vmatmul.mubr.bf16.gmra.mrb[0].mxu0 %v516
      %v735 = vpop.f32.mrb[0].mxu0
      %v736 = vadd.f32 %v555, %v735
      %v737 = vpop.f32.mrb[0].mxu0
      %v738 = vpop.f32.mrb[0].mxu0
      %v739 = vpop.f32.mrb[0].mxu0
      %740 = vdwg.mxu0
      %v741 = vmul.f32 %v688, 0.2
      %v742 = vmul.f32 %v691, 0.2
      %v743 = vmul.f32 %v696, 0.2
      %v744 = vmul.f32 %v699, 0.2
      %v745 = vmul.f32 %v704, 0.2
      %v746 = vmul.f32 %v707, 0.2
      %v747 = vmul.f32 %v712, 0.2
      %v748 = vmul.f32 %v715, 0.2
      %v749 = vmul.f32 %v720, 0.2
      %v750 = vmul.f32 %v723, 0.2
      %v751 = vmul.f32 %v728, 0.2
      %v752 = vmul.f32 %v731, 0.2
      %v753 = vmul.f32 %v736, 0.2
      %v754 = vmax.f32 %v688, %v741
      %v755 = vmax.f32 %v691, %v742
      %v756 = vmax.f32 %v696, %v743
      %v757 = vmax.f32 %v699, %v744
      %v758 = vmax.f32 %v704, %v745
      %v759 = vmax.f32 %v707, %v746
      %v760 = vmax.f32 %v712, %v747
      %v761 = vmax.f32 %v715, %v748
      %v762 = vmax.f32 %v720, %v749
      %v763 = vmax.f32 %v723, %v750
      %v764 = vmax.f32 %v728, %v751
      %v765 = vmax.f32 %v731, %v752
      %v766 = vmax.f32 %v736, %v753
      %v767 = vld [vmem:[%s5] sm:$0x1]
      %v769 = vlaneseq
      %v770 = vshrl.u32 %v769, 7
      %v771 = vsub.s32 0, %v770
      %v772 = vrot.slane %v767, %v771
      %v774 = vmul.f32 %v754, %v772
      %v775 = vmul.f32 %v755, %v772
      %v776 = vmul.f32 %v756, %v772
      %v777 = vmul.f32 %v757, %v772
      %v778 = vmul.f32 %v758, %v772
      %v779 = vmul.f32 %v759, %v772
      %v780 = vmul.f32 %v760, %v772
      %v781 = vmul.f32 %v761, %v772
      %v782 = vmul.f32 %v762, %v772
      %v783 = vmul.f32 %v763, %v772
      %v784 = vmul.f32 %v764, %v772
      %v785 = vmul.f32 %v765, %v772
      %v786 = vmul.f32 %v766, %v772
      %787 = vadd.xlane.f32.xlu0 %v774
      %v788 = vpop.xlane.xlu0 %787
      %789 = vadd.xlane.f32.xlu0 %v775
      %v790 = vpop.xlane.xlu0 %789
      %791 = vadd.xlane.f32.xlu0 %v776
      %v792 = vpop.xlane.xlu0 %791
      %793 = vadd.xlane.f32.xlu0 %v777
      %v794 = vpop.xlane.xlu0 %793
      %795 = vadd.xlane.f32.xlu0 %v778
      %v796 = vpop.xlane.xlu0 %795
      %797 = vadd.xlane.f32.xlu0 %v779
      %v798 = vpop.xlane.xlu0 %797
      %799 = vadd.xlane.f32.xlu0 %v780
      %v800 = vpop.xlane.xlu0 %799
      %801 = vadd.xlane.f32.xlu0 %v781
      %v802 = vpop.xlane.xlu0 %801
      %803 = vadd.xlane.f32.xlu0 %v782
      %v804 = vpop.xlane.xlu0 %803
      %805 = vadd.xlane.f32.xlu0 %v783
      %v806 = vpop.xlane.xlu0 %805
      %807 = vadd.xlane.f32.xlu0 %v784
      %v808 = vpop.xlane.xlu0 %807
      %809 = vadd.xlane.f32.xlu0 %v785
      %v810 = vpop.xlane.xlu0 %809
      %811 = vadd.xlane.f32.xlu0 %v786
      %v812 = vpop.xlane.xlu0 %811
      %v813 = vld [vmem:[#allocation2] sm:$0x1]
      %v815 = vlaneseq
      %v816 = vshrl.u32 %v815, 7
      %v817 = vsub.s32 0, %v816
      %v818 = vrot.slane %v813, %v817
      %v820 = vadd.f32 %v788, %v818
      %v821 = vadd.f32 %v790, %v818
      %v822 = vadd.f32 %v792, %v818
      %v823 = vadd.f32 %v794, %v818
      %v824 = vadd.f32 %v796, %v818
      %v825 = vadd.f32 %v798, %v818
      %v826 = vadd.f32 %v800, %v818
      %v827 = vadd.f32 %v802, %v818
      %v828 = vadd.f32 %v804, %v818
      %v829 = vadd.f32 %v806, %v818
      %v830 = vadd.f32 %v808, %v818
      %v831 = vadd.f32 %v810, %v818
      %v832 = vadd.f32 %v812, %v818
      %v833 = vxor.u32 %v820, 2147483648
      %v834 = vxor.u32 %v821, 2147483648
      %v835 = vxor.u32 %v822, 2147483648
      %v836 = vxor.u32 %v823, 2147483648
      %v837 = vxor.u32 %v824, 2147483648
      %v838 = vxor.u32 %v825, 2147483648
      %v839 = vxor.u32 %v826, 2147483648
      %v840 = vxor.u32 %v827, 2147483648
      %v841 = vxor.u32 %v828, 2147483648
      %v842 = vxor.u32 %v829, 2147483648
      %v843 = vxor.u32 %v830, 2147483648
      %v844 = vxor.u32 %v831, 2147483648
      %v845 = vxor.u32 %v832, 2147483648
      %v846 = vmul.f32 %v833, 1.442695
      %v847 = vpow.pop %v846
      %v848 = vmul.f32 %v834, 1.442695
      %v849 = vpow.pop %v848
      %v850 = vmul.f32 %v835, 1.442695
      %v851 = vpow.pop %v850
      %v852 = vmul.f32 %v836, 1.442695
      %v853 = vpow.pop %v852
      %v854 = vmul.f32 %v837, 1.442695
      %v855 = vpow.pop %v854
      %v856 = vmul.f32 %v838, 1.442695
      %v857 = vpow.pop %v856
      %v858 = vmul.f32 %v839, 1.442695
      %v859 = vpow.pop %v858
      %v860 = vmul.f32 %v840, 1.442695
      %v861 = vpow.pop %v860
      %v862 = vmul.f32 %v841, 1.442695
      %v863 = vpow.pop %v862
      %v864 = vmul.f32 %v842, 1.442695
      %v865 = vpow.pop %v864
      %v866 = vmul.f32 %v843, 1.442695
      %v867 = vpow.pop %v866
      %v868 = vmul.f32 %v844, 1.442695
      %v869 = vpow.pop %v868
      %v870 = vmul.f32 %v845, 1.442695
      %v871 = vpow.pop %v870
      %v872 = vadd.f32 %v847, 1.0
      %v873 = vadd.f32 %v849, 1.0
      %v874 = vadd.f32 %v851, 1.0
      %v875 = vadd.f32 %v853, 1.0
      %v876 = vadd.f32 %v855, 1.0
      %v877 = vadd.f32 %v857, 1.0
      %v878 = vadd.f32 %v859, 1.0
      %v879 = vadd.f32 %v861, 1.0
      %v880 = vadd.f32 %v863, 1.0
      %v881 = vadd.f32 %v865, 1.0
      %v882 = vadd.f32 %v867, 1.0
      %v883 = vadd.f32 %v869, 1.0
      %v884 = vadd.f32 %v871, 1.0
      %v885 = vrcp.pop %v872
      %v886 = vmul.f32 1.0, %v885
      %v887 = vrcp.pop %v873
      %v888 = vmul.f32 1.0, %v887
      %v889 = vrcp.pop %v874
      %v890 = vmul.f32 1.0, %v889
      %v891 = vrcp.pop %v875
      %v892 = vmul.f32 1.0, %v891
      %v893 = vrcp.pop %v876
      %v894 = vmul.f32 1.0, %v893
      %v895 = vrcp.pop %v877
      %v896 = vmul.f32 1.0, %v895
      %v897 = vrcp.pop %v878
      %v898 = vmul.f32 1.0, %v897
      %v899 = vrcp.pop %v879
      %v900 = vmul.f32 1.0, %v899
      %v901 = vrcp.pop %v880
      %v902 = vmul.f32 1.0, %v901
      %v903 = vrcp.pop %v881
      %v904 = vmul.f32 1.0, %v903
      %v905 = vrcp.pop %v882
      %v906 = vmul.f32 1.0, %v905
      %v907 = vrcp.pop %v883
      %v908 = vmul.f32 1.0, %v907
      %v909 = vrcp.pop %v884
      %v910 = vmul.f32 1.0, %v909
      %vm911 = vcmask 7168
      %912 = vst.msk [vmem:[%s282] sm:$0xff] %vm911, %v886
      %913 = vst.msk [vmem:[%s282 + $0x8] sm:$0xff] %vm911, %v888
      %914 = vst.msk [vmem:[%s282 + $0x10] sm:$0xff] %vm911, %v890
      %915 = vst.msk [vmem:[%s282 + $0x18] sm:$0xff] %vm911, %v892
      %916 = vst.msk [vmem:[%s282 + $0x20] sm:$0xff] %vm911, %v894
      %917 = vst.msk [vmem:[%s282 + $0x28] sm:$0xff] %vm911, %v896
      %918 = vst.msk [vmem:[%s282 + $0x30] sm:$0xff] %vm911, %v898
      %919 = vst.msk [vmem:[%s282 + $0x38] sm:$0xff] %vm911, %v900
      %920 = vst.msk [vmem:[%s282 + $0x40] sm:$0xff] %vm911, %v902
      %921 = vst.msk [vmem:[%s282 + $0x48] sm:$0xff] %vm911, %v904
      %922 = vst.msk [vmem:[%s282 + $0x50] sm:$0xff] %vm911, %v906
      %923 = vst.msk [vmem:[%s282 + $0x58] sm:$0xff] %vm911, %v908
      %924 = vst.msk [vmem:[%s282 + $0x60] sm:$0xff] %vm911, %v910
      %s925 = smul.u32 13, %s20
      %p926 = scmp.lt.s32.totalorder %s925, 25
      %s927 = scalar_select %p926, %s925, 25
      %s928 = smul.addr %s927, 8
      %s929 = scalar_lea.vmem %s7, %s928
      // Predicated region
      $region49: #{tpu_custom_call.1} parent=47 // pred_check
        %p930 = pneg %p190
      $region50: #{tpu_custom_call.1} parent=47 // pred_check_branch
        %932 = sbr.rel (%p930) target = $region52
      $region51: #{tpu_custom_call.1} parent=47 // pred_region
        %s933 = smul.u32 13, %s20
      $region52: #{tpu_custom_call.1} parent=47 // pred_fallthru
        _
    $region48: #{tpu_custom_call.1} parent=5 // pred_fallthru
      _
    %p934 = scmp.le.s32.totalorder 2, %s15
    // Predicated region
    $region53: #{tpu_custom_call.1} parent=5 // pred_check
      %p935 = pneg %p934
    $region54: #{tpu_custom_call.1} parent=5 // pred_check_branch
      %937 = sbr.rel (%p935) target = $region56
    $region55: #{tpu_custom_call.1} parent=5 // pred_region
      %s938 = ssub.s32 %s15, 2
      // Predicated region
      $region57: #{tpu_custom_call.1} parent=55 // pred_check
        %p939 = pneg %p196
      $region58: #{tpu_custom_call.1} parent=55 // pred_check_branch
        %941 = sbr.rel (%p939) target = $region60
      $region59: #{tpu_custom_call.1} parent=55 // pred_region
        %s942 = smul.u32 13, %s21
        %p943 = scmp.lt.s32.totalorder %s942, 25
        %s944 = scalar_select %p943, %s942, 25
        %s945 = smul.addr %s944, 8
        %s946 = scalar_lea.vmem %s7, %s945
      $region60: #{tpu_custom_call.1} parent=55 // pred_fallthru
        _
    $region56: #{tpu_custom_call.1} parent=5 // pred_fallthru
      _
  $region6: #{tpu_custom_call.1} parent=0 // loop_footer
    %s19 = sadd.s32 1, %s15
  $region7: #{tpu_custom_call.1} parent=0 // loop_footer_branch
    %14 = sbr.rel target = $region3
  $region8: #{tpu_custom_call.1} parent=0 // loop_exit
    _

</llo_original>
